<compile_context>
chip_gen: v7x
topology: tpu7x:2x2x1
jax: 0.10.0
libtpu: 0.0.40
codegen_flags: <defaults>
</compile_context>

<pallas_src>
import functools

import jax
import jax.numpy as jnp
from jax.experimental import pallas as pl
from jax.experimental.pallas import tpu as pltpu


def _focal_sum_kernel(*refs, gamma, use_alpha, s_total, tile_s, n_s_tiles,
                      ragged):
    n_in = 3 if use_alpha else 2
    if use_alpha:
        logits_ref, tgt_ref, alpha_ref = refs[:n_in]
    else:
        logits_ref, tgt_ref = refs[:n_in]
        alpha_ref = None
    out_ref = refs[n_in]
    single_tile = (n_s_tiles == 1)
    acc_ref = None if single_tile else refs[n_in + 1]

    s = pl.program_id(1)

    # ---- per-tile contribution: +(1-pt)^gamma * alpha_t * log(p_t) ---------
    x = logits_ref[...].astype(jnp.float32)        # (TM, K, tile_s), cast post-load
    tgt = tgt_ref[...]                             # (TM, 1, tile_s) int32

    # Numerically stable softmax pieces over the class (sublane) axis.
    mx = jnp.max(x, axis=1, keepdims=True)         # (TM, 1, tile_s)
    sh = x - mx                                    # (TM, K, tile_s)
    e = jnp.exp(sh)                                # one EUP pass over the K rows
    esum = jnp.sum(e, axis=1, keepdims=True)       # (TM, 1, tile_s)

    cls_ids = jax.lax.broadcasted_iota(jnp.int32, sh.shape, 1)
    onehot = cls_ids == tgt                        # (TM, K, tile_s)
    sel_sh = jnp.sum(jnp.where(onehot, sh, 0.0), axis=1, keepdims=True)
    contrib = sel_sh - jnp.log(esum)               # unweighted log p_t

    if gamma != 0:
        # pt from exp(sh) already computed for esum — no second EUP exp.
        # sel_e <= esum elementwise, so 1 - pt stays >= 0 with the divide.
        sel_e = jnp.sum(jnp.where(onehot, e, 0.0), axis=1, keepdims=True)
        pt = sel_e / esum
        omp = 1.0 - pt
        g = float(gamma)
        if g.is_integer() and 1.0 <= g <= 8.0:
            # Small integer gamma: explicit multiplies (no pow -> exp/log).
            w = omp
            for _ in range(int(g) - 1):
                w = w * omp
        else:
            w = jnp.maximum(omp, 0.0) ** gamma     # cheap clamp vs fp rounding
        contrib = w * contrib
    if use_alpha:                                  # compile-time specialization
        at = jnp.sum(jnp.where(onehot, alpha_ref[...], 0.0),
                     axis=1, keepdims=True)
        contrib = contrib * at
    # NOTE: the "-1 *" of the PyTorch loss is folded into the wrapper scale.

    def write_total(total):
        # Zero-filled (1, 8, 128) slab with the tile total in one element:
        # the wrapper can then reduce with a dense jnp.sum (no strided gather)
        # and the sum stays exact (all other elements are 0).
        r = jax.lax.broadcasted_iota(jnp.int32, out_ref.shape, 1)
        c = jax.lax.broadcasted_iota(jnp.int32, out_ref.shape, 2)
        out_ref[...] = jnp.where((r == 0) & (c == 0), total, 0.0)

    if single_tile:
        # One spatial tile: no accumulator scratch, no init/finalize passes.
        write_total(jnp.sum(contrib))
        return

    @pl.when(s == 0)
    def _init():
        acc_ref[...] = jnp.zeros_like(acc_ref)

    last = n_s_tiles - 1
    if ragged:
        @pl.when(s == last)
        def _acc_tail():                           # only last tile needs a mask
            lane = jax.lax.broadcasted_iota(jnp.int32, contrib.shape, 2)
            valid = (last * tile_s + lane) < s_total
            # Keep select form (NOT multiplicative): out-of-bounds lanes may
            # hold NaN/Inf garbage that must not propagate.
            acc_ref[...] += jnp.where(valid, contrib, 0.0)

        @pl.when(s != last)
        def _acc_body():
            acc_ref[...] += contrib
    else:
        acc_ref[...] += contrib

    @pl.when(s == last)
    def _finalize():
        write_total(jnp.sum(acc_ref[...]))


def _vmem_params():
    """(tile budget bytes, vmem_limit_bytes or None), generation aware."""
    kind = ""
    try:
        kind = jax.devices()[0].device_kind.lower()
    except Exception:
        pass
    if ("v6" in kind) or ("v7" in kind) or ("7x" in kind):
        return 24 * 1024 * 1024, 32 * 1024 * 1024
    if "v5" in kind:
        return 12 * 1024 * 1024, 32 * 1024 * 1024
    # Unknown / older chip: stay inside the default scoped-VMEM limit.
    return 8 * 1024 * 1024, None


def _choose_tiles(M, S, K, itemsize, tile_s, tile_m, budget):
    """Pick (tile_s, tile_m): lane tile as big as the budget allows (64K-lane
    cap), and the largest divisor of M <= 8 rows per grid step that fits."""
    # VMEM bytes per lane per M-row: 2 logits buffers + 2 int32 target buffers
    # + 1 f32 accumulator row (double-buffered pipeline).
    per_row_lane = 2 * K * itemsize + 2 * 4 + 4

    if tile_s is None:
        max_lanes = budget // per_row_lane
        max_lanes = max(128, min(64 * 1024, (max_lanes // 128) * 128))
        if S <= max_lanes:
            tile_s = S                       # one spatial tile, no ragged mask
        else:
            tile_s = max_lanes               # ragged fallback
            t = max_lanes
            while t >= 128:                  # prefer a divisor of S (mask compiled out)
                if S % t == 0:
                    tile_s = t
                    break
                t -= 128
    else:
        tile_s = min(int(tile_s), S)
        if tile_s != S and tile_s % 128 != 0:
            raise ValueError("tile_s must equal H*W or be a multiple of 128")

    if tile_m is None:
        fit = max(1, budget // max(1, tile_s * per_row_lane))
        cap = int(min(8, M, fit))
        tile_m = 1
        for d in range(cap, 0, -1):          # largest divisor of M (no ragged M)
            if M % d == 0:
                tile_m = d
                break
    else:
        tile_m = int(tile_m)
        if tile_m <= 0 or M % tile_m != 0:
            raise ValueError("tile_m must be a positive divisor of B*T")

    return tile_s, tile_m


def focal_loss_w_me(x, y, *, gamma=0, alpha=None, hs_lambda=0.9,
                    size_average=True, ignore_index=None,
                    tile_s=None, tile_m=None):
    """JAX/Pallas equivalent of FocalLosswME.forward."""
    # TODO(synk): ignore_index requires data-dependent row compaction (boolean
    # gather) with no clean static Pallas tiling; only ignore_index=None works.
    assert ignore_index is None

    logits = x['logits']              # (B, T, K, H, W), native dtype (f32/bf16)
    hs_logits = x['hs_logits']
    gt = y['gt']                      # (B, T, H, W) integer class ids
    acc_perf = y['acc_perf']
    _ = y.get('miou_perf')            # present in the dict but unused by forward

    B, T, K, H, W = logits.shape
    M, S = B * T, H * W
    n_total = M * S

    # Native-layout views only (no transpose / dtype cast / pad => no extra HBM
    # passes).  The kernel pairs logits[m, :, s] with gt[m, s] — the same
    # (bt, hw, k) pairing as PyTorch's view/transpose/view sequence.
    pred = logits.reshape(M, K, S)
    tgt = gt.reshape(M, 1, S)
    if tgt.dtype != jnp.int32:
        # Caller contract: pass int32 gt; other int dtypes cost an extra HBM
        # pass here (outside the kernel).
        tgt = tgt.astype(jnp.int32)

    # Tiny L1 head-score loss: plain XLA on B*T elements, folded in afterwards.
    hs_loss = jnp.mean(jnp.abs(hs_logits.astype(jnp.float32)
                               - acc_perf.astype(jnp.float32)))

    # alpha handling (mirrors the PyTorch constructor).
    use_alpha = alpha is not None
    alpha_arr = None
    if use_alpha:
        if isinstance(alpha, (float, int)):
            # PyTorch builds [alpha, 1-alpha] (binary); classes >= 2 would make
            # its gather fail — here they get weight 1.0.
            vals = ([float(alpha), 1.0 - float(alpha)] + [1.0] * K)[:K]
            alpha_vec = jnp.asarray(vals, jnp.float32)
        else:
            alpha_vec = jnp.asarray(alpha, jnp.float32).reshape(-1)[:K]
        alpha_arr = alpha_vec.reshape(K, 1)

    budget, vmem_limit = _vmem_params()
    tile_s, tile_m = _choose_tiles(M, S, K, jnp.dtype(logits.dtype).itemsize,
                                   tile_s, tile_m, budget)
    n_s_tiles = (S + tile_s - 1) // tile_s
    n_m_tiles = M // tile_m
    ragged = (S % tile_s) != 0

    kernel = functools.partial(
        _focal_sum_kernel, gamma=gamma, use_alpha=use_alpha,
        s_total=S, tile_s=tile_s, n_s_tiles=n_s_tiles, ragged=ragged)

    # Lane-dense blocks: spatial dim on lanes, full K on sublanes, TM rows of
    # B*T per grid step.
    in_specs = [
        pl.BlockSpec((tile_m, K, tile_s), lambda m, s: (m, 0, s)),   # logits
        pl.BlockSpec((tile_m, 1, tile_s), lambda m, s: (m, 0, s)),   # targets
    ]
    args = [pred, tgt]
    if use_alpha:
        in_specs.append(pl.BlockSpec((K, 1), lambda m, s: (0, 0)))
        args.append(alpha_arr)

    scratch_shapes = []
    if n_s_tiles > 1:
        scratch_shapes.append(pltpu.VMEM((tile_m, 1, tile_s), jnp.float32))

    cp_kwargs = dict(dimension_semantics=("parallel", "arbitrary"))
    if vmem_limit is not None:
        cp_kwargs["vmem_limit_bytes"] = vmem_limit

    partials = pl.pallas_call(
        kernel,
        out_shape=jax.ShapeDtypeStruct((n_m_tiles, 8, 128), jnp.float32),
        grid_spec=pltpu.PrefetchScalarGridSpec(
            num_scalar_prefetch=0,
            grid=(n_m_tiles, n_s_tiles),                  # reduction axis last
            in_specs=in_specs,
            out_specs=pl.BlockSpec((1, 8, 128), lambda m, s: (m, 0, 0)),
            scratch_shapes=scratch_shapes,
        ),
        compiler_params=pltpu.CompilerParams(**cp_kwargs),
    )(*args)

    # One nonzero element per M-tile, rest zero-filled -> dense contiguous sum
    # (no strided [:,0,0] gather).  pos_sum = sum_i (1-pt)^g * at * logpt_i.
    pos_sum = jnp.sum(partials)

    if size_average:
        # mean over N of (hs_loss + hs_lambda * (-pos_i))
        return hs_loss - hs_lambda * (pos_sum / n_total)
    # sum over N of (hs_loss + hs_lambda * (-pos_i))
    return n_total * hs_loss - hs_lambda * pos_sum


def _reference(x, y, *, gamma=0, alpha=None, hs_lambda=0.9, size_average=True):
    """Pure-JAX reference mirroring the PyTorch forward."""
    logits = x['logits']
    B, T, K, H, W = logits.shape
    pred = logits.reshape(B * T, K, H * W).transpose(0, 2, 1).reshape(-1, K)
    target = y['gt'].reshape(-1).astype(jnp.int32)
    hs_loss = jnp.mean(jnp.abs(x['hs_logits'].astype(jnp.float32)
                               - y['acc_perf'].astype(jnp.float32)))
    logsm = jax.nn.log_softmax(pred.astype(jnp.float32), axis=-1)
    logpt = jnp.take_along_axis(logsm, target[:, None], axis=1)[:, 0]
    pt = jnp.exp(logpt)
    if alpha is not None:
        av = jnp.asarray(alpha, jnp.float32)
        logpt = logpt * av[target]
    loss = -1.0 * (1.0 - pt) ** gamma * logpt if gamma != 0 else -1.0 * logpt
    loss = hs_loss + hs_lambda * loss
    return jnp.mean(loss) if size_average else jnp.sum(loss)


if __name__ == "__main__":
    key = jax.random.PRNGKey(0)

    def make_inputs(k, B, T, K, H, W, logits_dtype=jnp.float32):
        k1, k2, k3, k4 = jax.random.split(k, 4)
        x = {'logits': jax.random.normal(k1, (B, T, K, H, W),
                                         jnp.float32).astype(logits_dtype),
             'hs_logits': jax.random.normal(k2, (B, T), jnp.float32)}
        y = {'gt': jax.random.randint(k3, (B, T, H, W), 0, K, jnp.int32),
             'acc_perf': jax.random.uniform(k4, (B, T), jnp.float32),
             'miou_perf': jnp.zeros((B, T), jnp.float32)}  # unused by forward
        return x, y

    checks = []

    # 1) gamma=0, alpha=None, mean — single spatial tile, TM=4 rows per step.
    x, y = make_inputs(jax.random.fold_in(key, 0), 2, 2, 4, 8, 8)
    checks.append((
        focal_loss_w_me(x, y, gamma=0, alpha=None, hs_lambda=0.9,
                        size_average=True),
        _reference(x, y, gamma=0, alpha=None, hs_lambda=0.9,
                   size_average=True)))

    # 2) gamma=2, per-class alpha, sum reduction.
    x, y = make_inputs(jax.random.fold_in(key, 1), 2, 2, 4, 8, 8)
    al = [0.1, 0.2, 0.3, 0.4]
    checks.append((
        focal_loss_w_me(x, y, gamma=2, alpha=al, hs_lambda=0.9,
                        size_average=False),
        _reference(x, y, gamma=2, alpha=al, hs_lambda=0.9,
                   size_average=False)))

    # 3) ragged spatial tiling + M blocking (H*W=144 with tile_s=128, TM=2).
    x, y = make_inputs(jax.random.fold_in(key, 2), 1, 2, 3, 12, 12)
    checks.append((
        focal_loss_w_me(x, y, gamma=2, alpha=None, hs_lambda=0.5,
                        size_average=True, tile_s=128),
        _reference(x, y, gamma=2, alpha=None, hs_lambda=0.5,
                   size_average=True)))

    # 4) bf16 logits end-to-end (HBM-bound path on v5e/v6e), gamma=2, mean.
    x, y = make_inputs(jax.random.fold_in(key, 3), 2, 1, 4, 8, 8,
                       logits_dtype=jnp.bfloat16)
    checks.append((
        focal_loss_w_me(x, y, gamma=2, alpha=None, hs_lambda=0.9,
                        size_average=True),
        _reference(x, y, gamma=2, alpha=None, hs_lambda=0.9,
                   size_average=True)))

    # 5) non-integer gamma (pow path + clamp) + scalar binary alpha, K=2.
    x, y = make_inputs(jax.random.fold_in(key, 4), 1, 3, 2, 8, 16)
    checks.append((
        focal_loss_w_me(x, y, gamma=0.5, alpha=0.25, hs_lambda=0.7,
                        size_average=True),
        _reference(x, y, gamma=0.5, alpha=[0.25, 0.75], hs_lambda=0.7,
                   size_average=True)))

    for i, (got, want) in enumerate(checks):
        got = jax.block_until_ready(got)
        assert jnp.allclose(got, want, rtol=1e-5, atol=1e-5), (i, got, want)

    print("KERNEL_OK")
</pallas_src>

<mosaic_0001>
module attributes {stable_mosaic.version = 11 : i64} {
  func.func @_focal_sum_kernel(%arg0: i32, %arg1: i32, %arg2: memref<4x4x64xf32, #tpu.memory_space<vmem>>, %arg3: memref<4x1x64xi32, #tpu.memory_space<vmem>>, %arg4: memref<1x8x128xf32, #tpu.memory_space<vmem>>) attributes {dimension_semantics = [#tpu.dimension_semantics<parallel>, #tpu.dimension_semantics<arbitrary>], iteration_bounds = array<i64: 1, 1>, scalar_prefetch = 0 : i64, scratch_operands = 0 : i64, tpu.core_type = #tpu.core_type<tc>, window_params = [{transform_indices = @transform_0, window_bounds = array<i64: 4, 4, 64>}, {transform_indices = @transform_1, window_bounds = array<i64: 4, 1, 64>}, {transform_indices = @transform_2, window_bounds = array<i64: 1, 8, 128>}]} {
    %c0 = arith.constant 0 : index
    %c0_0 = arith.constant 0 : index
    %c0_1 = arith.constant 0 : index
    %0 = vector.load %arg2[%c0, %c0_0, %c0_1] : memref<4x4x64xf32, #tpu.memory_space<vmem>>, vector<4x4x64xf32>
    %c0_2 = arith.constant 0 : index
    %c0_3 = arith.constant 0 : index
    %c0_4 = arith.constant 0 : index
    %1 = vector.load %arg3[%c0_2, %c0_3, %c0_4] : memref<4x1x64xi32, #tpu.memory_space<vmem>>, vector<4x1x64xi32>
    %cst = arith.constant dense<0xFF800000> : vector<4x64xf32>
    %2 = vector.multi_reduction <maximumf>, %0, %cst [1] : vector<4x4x64xf32> to vector<4x64xf32>
    %3 = vector.shape_cast %2 : vector<4x64xf32> to vector<4x1x64xf32>
    %4 = vector.broadcast %3 : vector<4x1x64xf32> to vector<4x4x64xf32>
    %5 = arith.subf %0, %4 : vector<4x4x64xf32>
    %6 = math.exp %5 : vector<4x4x64xf32>
    %cst_5 = arith.constant dense<0.000000e+00> : vector<4x64xf32>
    %7 = vector.multi_reduction <add>, %6, %cst_5 [1] : vector<4x4x64xf32> to vector<4x64xf32>
    %8 = vector.shape_cast %7 : vector<4x64xf32> to vector<4x1x64xf32>
    %9 = tpu.iota {dimensions = array<i32: 1>} : vector<4x4x64xi32>
    %10 = vector.broadcast %1 : vector<4x1x64xi32> to vector<4x4x64xi32>
    %11 = arith.cmpi eq, %9, %10 : vector<4x4x64xi32>
    %cst_6 = arith.constant 0.000000e+00 : f32
    %12 = vector.broadcast %cst_6 : f32 to vector<4x4x64xf32>
    %13 = arith.select %11, %5, %12 : vector<4x4x64xi1>, vector<4x4x64xf32>
    %cst_7 = arith.constant dense<0.000000e+00> : vector<4x64xf32>
    %14 = vector.multi_reduction <add>, %13, %cst_7 [1] : vector<4x4x64xf32> to vector<4x64xf32>
    %15 = vector.shape_cast %14 : vector<4x64xf32> to vector<4x1x64xf32>
    %16 = math.log %8 : vector<4x1x64xf32>
    %17 = arith.subf %15, %16 : vector<4x1x64xf32>
    %18 = vector.shape_cast %17 : vector<4x1x64xf32> to vector<1x4x1x64xf32>
    %cst_8 = arith.constant dense<0.000000e+00> : vector<1xf32>
    %19 = vector.multi_reduction <add>, %18, %cst_8 [1, 2, 3] : vector<1x4x1x64xf32> to vector<1xf32>
    %20 = vector.shape_cast %19 : vector<1xf32> to vector<1x1x1x1xf32>
    %21 = vector.extract %20[0, 0, 0, 0] : f32 from vector<1x1x1x1xf32>
    %22 = tpu.iota {dimensions = array<i32: 1>} : vector<1x8x128xi32>
    %23 = tpu.iota {dimensions = array<i32: 2>} : vector<1x8x128xi32>
    %c0_i32 = arith.constant 0 : i32
    %24 = vector.broadcast %c0_i32 : i32 to vector<1x8x128xi32>
    %25 = arith.cmpi eq, %22, %24 : vector<1x8x128xi32>
    %c0_i32_9 = arith.constant 0 : i32
    %26 = vector.broadcast %c0_i32_9 : i32 to vector<1x8x128xi32>
    %27 = arith.cmpi eq, %23, %26 : vector<1x8x128xi32>
    %28 = arith.andi %25, %27 : vector<1x8x128xi1>
    %cst_10 = arith.constant 0.000000e+00 : f32
    %29 = vector.broadcast %21 : f32 to vector<1x8x128xf32>
    %30 = vector.broadcast %cst_10 : f32 to vector<1x8x128xf32>
    %31 = arith.select %28, %29, %30 : vector<1x8x128xi1>, vector<1x8x128xf32>
    %c0_11 = arith.constant 0 : index
    %c0_12 = arith.constant 0 : index
    %c0_13 = arith.constant 0 : index
    %32 = vector.load %arg4[%c0_11, %c0_12, %c0_13] : memref<1x8x128xf32, #tpu.memory_space<vmem>>, vector<1x8x128xf32>
    tpu.vector_store %arg4[%c0_11, %c0_12, %c0_13], %31 {strides = array<i32>} : memref<1x8x128xf32, #tpu.memory_space<vmem>>, vector<1x8x128xf32>,
    return
  }
  func.func @transform_0(%arg0: i32, %arg1: i32) -> (i32, i32, i32) {
    %c0_i32 = arith.constant 0 : i32
    %c0_i32_0 = arith.constant 0 : i32
    return %arg0, %c0_i32, %arg1 : i32, i32, i32
  }
  func.func @transform_1(%arg0: i32, %arg1: i32) -> (i32, i32, i32) {
    %c0_i32 = arith.constant 0 : i32
    %c0_i32_0 = arith.constant 0 : i32
    return %arg0, %c0_i32, %arg1 : i32, i32, i32
  }
  func.func @transform_2(%arg0: i32, %arg1: i32) -> (i32, i32, i32) {
    %c0_i32 = arith.constant 0 : i32
    %c0_i32_0 = arith.constant 0 : i32
    %c0_i32_1 = arith.constant 0 : i32
    return %arg0, %c0_i32, %c0_i32_0 : i32, i32, i32
  }
}

</mosaic_0001>

<llo_original>
// kernel: tpu_custom_call.1
$region0: #{tpu_custom_call.1}
  #allocation0 [shape = 'u32[]', space=smem, size = 0x4, offset = 0x4, fixed_abs, tag = 'smem constant byte address 0x4 - core index']
  #allocation1 [shape = 'u32[144,128]{1,0:T(1,128)}', space=vmem, size = 0x12000, scoped, tag = 'internal scratch']
  %s0 = inlined_call_operand.hbm [shape: f32[4,4,64], index: 0, kind: input, shape index: {}]
  %s1 = inlined_call_operand.hbm [shape: s32[4,1,64], index: 1, kind: input, shape index: {}]
  %s2 = inlined_call_operand.hbm [shape: f32[1,8,128], index: 2, kind: output, shape index: {}]
  %s3 = sld [smem:[#allocation0]]
  $region26: #{tpu_custom_call.1} parent=0
    _
  %s5 = ssub.s32 1, %s3
  %s6 = scalar_select 0, %s5, %s3
  $region1: #{tpu_custom_call.1} parent=0
    #allocation2 [shape = 'u8[8192]{0}', space=vmem, size = 0x2000, scoped, tag = 'input window, operand 0, single buffered']
    #allocation3 [shape = 's32[1]{0}', space=sflag, size = 0x4, scoped, tag = 'scoped memory for tpu_custom_call.1']
    #allocation4 [shape = 's32[1]{0}', space=sflag, size = 0x4, scoped, tag = 'scoped memory for tpu_custom_call.1']
    #allocation5 [shape = 'u8[2048]{0}', space=vmem, size = 0x800, scoped, tag = 'input window, operand 1, single buffered']
    #allocation6 [shape = 's32[1]{0}', space=sflag, size = 0x4, scoped, tag = 'scoped memory for tpu_custom_call.1']
    #allocation7 [shape = 'u8[4096]{0}', space=vmem, size = 0x1000, scoped, tag = 'output window, operand 0, single buffered']
    %7 = vsyncpa [#allocation3], 0
    %8 = vsyncpa [#allocation6], 0
    %9 = vsyncpa [#allocation4], 0
    // Predicated region
    $region2: #{tpu_custom_call.1} parent=1 // pred_check
      _
    $region3: #{tpu_custom_call.1} parent=1 // pred_check_branch
      %11 = sbr.rel (0) target = $region5
    $region4: #{tpu_custom_call.1} parent=1 // pred_region
      %s13 = ssub.s32 256, 256
      %14 = vsyncadd [#allocation3], %s13
      %s15 = sshll.u32 [#allocation2], 4
      %s16 = int_to_ptr.vmem [resolvable:$true] %s15
      %21 = dma.hbm_to_vmem [thread:$0]  %s0, 256, %s16, [#allocation3], 64, 64, 4
    $region5: #{tpu_custom_call.1} parent=1 // pred_fallthru
      _
    // Predicated region
    $region6: #{tpu_custom_call.1} parent=1 // pred_check
      _
    $region7: #{tpu_custom_call.1} parent=1 // pred_check_branch
      %23 = sbr.rel (0) target = $region9
    $region8: #{tpu_custom_call.1} parent=1 // pred_region
      %s25 = ssub.s32 64, 64
      %26 = vsyncadd [#allocation6], %s25
      %s27 = sshll.u32 [#allocation5], 4
      %s28 = int_to_ptr.vmem [resolvable:$true] %s27
      %33 = dma.hbm_to_vmem [thread:$0]  %s1, 64, %s28, [#allocation6], 16, 16, 1
    $region9: #{tpu_custom_call.1} parent=1 // pred_fallthru
      _
    // Predicated region
    $region10: #{tpu_custom_call.1} parent=1 // pred_check
      _
    $region11: #{tpu_custom_call.1} parent=1 // pred_check_branch
      %35 = sbr.rel (0) target = $region13
    $region12: #{tpu_custom_call.1} parent=1 // pred_region
      %36 = dma.done [#allocation3], 256
    $region13: #{tpu_custom_call.1} parent=1 // pred_fallthru
      _
    // Predicated region
    $region14: #{tpu_custom_call.1} parent=1 // pred_check
      _
    $region15: #{tpu_custom_call.1} parent=1 // pred_check_branch
      %38 = sbr.rel (0) target = $region17
    $region16: #{tpu_custom_call.1} parent=1 // pred_region
      %39 = dma.done [#allocation6], 64
    $region17: #{tpu_custom_call.1} parent=1 // pred_fallthru
      _
    %v40 = vld [vmem:[#allocation2] sm:$0xf]
    %v41 = vld [vmem:[#allocation2 + $0x4] sm:$0xf]
    %v42 = vld [vmem:[#allocation2 + $0x8] sm:$0xf]
    %v43 = vld [vmem:[#allocation2 + $0xc] sm:$0xf]
    %v44 = vld [vmem:[#allocation5] sm:$0x1]
    %v45 = vld [vmem:[#allocation5 + $0x1] sm:$0x1]
    %v46 = vld [vmem:[#allocation5 + $0x2] sm:$0x1]
    %v47 = vld [vmem:[#allocation5 + $0x3] sm:$0x1]
    %vm48 = vcmask 519168
    %v49 = vsel %vm48, %v40, -inf
    %v50 = vrot.slane %v49, 4
    %v51 = vmax.f32 %v49, %v50
    %v52 = vrot.slane %v51, 2
    %v53 = vmax.f32 %v51, %v52
    %v54 = vrot.slane %v53, 1
    %v55 = vmax.f32 %v53, %v54
    %v56 = vsel %vm48, %v41, -inf
    %v57 = vrot.slane %v56, 4
    %v58 = vmax.f32 %v56, %v57
    %v59 = vrot.slane %v58, 2
    %v60 = vmax.f32 %v58, %v59
    %v61 = vrot.slane %v60, 1
    %v62 = vmax.f32 %v60, %v61
    %v63 = vsel %vm48, %v42, -inf
    %v64 = vrot.slane %v63, 4
    %v65 = vmax.f32 %v63, %v64
    %v66 = vrot.slane %v65, 2
    %v67 = vmax.f32 %v65, %v66
    %v68 = vrot.slane %v67, 1
    %v69 = vmax.f32 %v67, %v68
    %v70 = vsel %vm48, %v43, -inf
    %v71 = vrot.slane %v70, 4
    %v72 = vmax.f32 %v70, %v71
    %v73 = vrot.slane %v72, 2
    %v74 = vmax.f32 %v72, %v73
    %v75 = vrot.slane %v74, 1
    %v76 = vmax.f32 %v74, %v75
    %v77 = vsub.f32 %v40, %v55
    %v78 = vsub.f32 %v41, %v62
    %v79 = vsub.f32 %v42, %v69
    %v80 = vsub.f32 %v43, %v76
    %v81 = vmul.f32 %v77, 1.442695
    %v82 = vpow.pop %v81
    %v83 = vmul.f32 %v78, 1.442695
    %v84 = vpow.pop %v83
    %v85 = vmul.f32 %v79, 1.442695
    %v86 = vpow.pop %v85
    %v87 = vmul.f32 %v80, 1.442695
    %v88 = vpow.pop %v87
    %v89 = vsel %vm48, %v82, 0.0
    %v90 = vrot.slane %v89, 4
    %v91 = vadd.f32 %v89, %v90
    %v92 = vrot.slane %v91, 2
    %v93 = vadd.f32 %v91, %v92
    %v94 = vrot.slane %v93, 1
    %v95 = vadd.f32 %v93, %v94
    %v96 = vsel %vm48, %v84, 0.0
    %v97 = vrot.slane %v96, 4
    %v98 = vadd.f32 %v96, %v97
    %v99 = vrot.slane %v98, 2
    %v100 = vadd.f32 %v98, %v99
    %v101 = vrot.slane %v100, 1
    %v102 = vadd.f32 %v100, %v101
    %v103 = vsel %vm48, %v86, 0.0
    %v104 = vrot.slane %v103, 4
    %v105 = vadd.f32 %v103, %v104
    %v106 = vrot.slane %v105, 2
    %v107 = vadd.f32 %v105, %v106
    %v108 = vrot.slane %v107, 1
    %v109 = vadd.f32 %v107, %v108
    %v110 = vsel %vm48, %v88, 0.0
    %v111 = vrot.slane %v110, 4
    %v112 = vadd.f32 %v110, %v111
    %v113 = vrot.slane %v112, 2
    %v114 = vadd.f32 %v112, %v113
    %v115 = vrot.slane %v114, 1
    %v116 = vadd.f32 %v114, %v115
    %v117 = vlaneseq
    %v118 = vshrl.u32 %v117, 7
    %v119 = vlaneseq
    %v120 = vshrl.u32 %v119, 7
    %v121 = vsub.s32 0, %v120
    %v122 = vrot.slane %v44, %v121
    %v123 = vlaneseq
    %v124 = vshrl.u32 %v123, 7
    %v125 = vsub.s32 0, %v124
    %v126 = vrot.slane %v45, %v125
    %v127 = vlaneseq
    %v128 = vshrl.u32 %v127, 7
    %v129 = vsub.s32 0, %v128
    %v130 = vrot.slane %v46, %v129
    %v131 = vlaneseq
    %v132 = vshrl.u32 %v131, 7
    %v133 = vsub.s32 0, %v132
    %v134 = vrot.slane %v47, %v133
    %vm135 = vcmp.eq.s32.totalorder %v118, %v122
    %vm136 = vcmp.eq.s32.totalorder %v118, %v126
    %vm137 = vcmp.eq.s32.totalorder %v118, %v130
    %vm138 = vcmp.eq.s32.totalorder %v118, %v134
    %v139 = vsel %vm135, %v77, 0.0
    %v140 = vsel %vm136, %v78, 0.0
    %v141 = vsel %vm137, %v79, 0.0
    %v142 = vsel %vm138, %v80, 0.0
    %v143 = vsel %vm48, %v139, 0.0
    %v144 = vrot.slane %v143, 4
    %v145 = vadd.f32 %v143, %v144
    %v146 = vrot.slane %v145, 2
    %v147 = vadd.f32 %v145, %v146
    %v148 = vrot.slane %v147, 1
    %v149 = vadd.f32 %v147, %v148
    %v150 = vsel %vm48, %v140, 0.0
    %v151 = vrot.slane %v150, 4
    %v152 = vadd.f32 %v150, %v151
    %v153 = vrot.slane %v152, 2
    %v154 = vadd.f32 %v152, %v153
    %v155 = vrot.slane %v154, 1
    %v156 = vadd.f32 %v154, %v155
    %v157 = vsel %vm48, %v141, 0.0
    %v158 = vrot.slane %v157, 4
    %v159 = vadd.f32 %v157, %v158
    %v160 = vrot.slane %v159, 2
    %v161 = vadd.f32 %v159, %v160
    %v162 = vrot.slane %v161, 1
    %v163 = vadd.f32 %v161, %v162
    %v164 = vsel %vm48, %v142, 0.0
    %v165 = vrot.slane %v164, 4
    %v166 = vadd.f32 %v164, %v165
    %v167 = vrot.slane %v166, 2
    %v168 = vadd.f32 %v166, %v167
    %v169 = vrot.slane %v168, 1
    %v170 = vadd.f32 %v168, %v169
    %v171 = vlog2.pop %v95
    %v172 = vmul.f32 %v171, 0.6931472
    %v173 = vlog2.pop %v102
    %v174 = vmul.f32 %v173, 0.6931472
    %v175 = vlog2.pop %v109
    %v176 = vmul.f32 %v175, 0.6931472
    %v177 = vlog2.pop %v116
    %v178 = vmul.f32 %v177, 0.6931472
    %v179 = vsub.f32 %v149, %v172
    %v180 = vsub.f32 %v156, %v174
    %v181 = vsub.f32 %v163, %v176
    %v182 = vsub.f32 %v170, %v178
    %vm183 = vcmask 516096
    %v184 = vsel %vm183, %v179, 0.0
    %v185 = vsel %vm183, %v180, 0.0
    %v186 = vadd.f32 %v184, %v185
    %v187 = vsel %vm183, %v181, 0.0
    %v188 = vadd.f32 %v186, %v187
    %v189 = vsel %vm183, %v182, 0.0
    %v190 = vadd.f32 %v188, %v189
    %191 = vadd.xlane.f32.xlu0 %v190
    %v192 = vpop.xlane.xlu0 %191
    %v193 = vrot.slane %v192, 4
    %v194 = vadd.f32 %v192, %v193
    %v195 = vrot.slane %v194, 2
    %v196 = vadd.f32 %v194, %v195
    %v197 = vrot.slane %v196, 1
    %v198 = vadd.f32 %v196, %v197
    %s199 = vtos %v198
    %v200 = vlaneseq
    %v201 = vand.u32 %v200, 127
    %vm202 = vcmp.eq.s32.totalorder %v118, 0
    %vm203 = vcmp.eq.s32.totalorder %v201, 0
    %vm204 = vmand %vm202, %vm203
    %v205 = vstv %s199
    %v206 = vsel %vm204, %v205, 0.0
    %207 = vst [vmem:[#allocation7] sm:$0xff] %v206
    // Predicated region
    $region18: #{tpu_custom_call.1} parent=1 // pred_check
      _
    $region19: #{tpu_custom_call.1} parent=1 // pred_check_branch
      %209 = sbr.rel (0) target = $region21
    $region20: #{tpu_custom_call.1} parent=1 // pred_region
      %s211 = ssub.s32 128, 128
      %212 = vsyncadd [#allocation4], %s211
      %s214 = sshll.u32 [#allocation7], 4
      %s215 = int_to_ptr.vmem [resolvable:$true] %s214
      %217 = dma.vmem_to_hbm [thread:$0]  %s215, 128, %s2, [#allocation4]
    $region21: #{tpu_custom_call.1} parent=1 // pred_fallthru
      _
    // Predicated region
    $region22: #{tpu_custom_call.1} parent=1 // pred_check
      _
    $region23: #{tpu_custom_call.1} parent=1 // pred_check_branch
      %219 = sbr.rel (0) target = $region25
    $region24: #{tpu_custom_call.1} parent=1 // pred_region
      %220 = dma.done [#allocation4], 128
    $region25: #{tpu_custom_call.1} parent=1 // pred_fallthru
      _
    %221 = vsyncpa [#allocation3], 1
    %222 = vsyncpa [#allocation6], 1
    %223 = vsyncpa [#allocation4], 1

</llo_original>
